<compile_context>
chip_gen: v6e
topology: v6e:2x2x1
jax: 0.10.0
libtpu: 0.0.40
codegen_flags: <defaults>
</compile_context>

<pallas_src>
import functools

import jax
import jax.numpy as jnp
from jax.experimental import pallas as pl
from jax.experimental.pallas import tpu as pltpu


_MAX_TILE_ROWS = 32768          # ~2 MiB of x per buffer at in_ch=16 f32; amortizes
                                # the ~0.35 us per-grid-step overhead ~30x vs tb=1024.
_VMEM_TILE_BUDGET = 24 << 20    # conservative even for v7x's 64 MiB physical VMEM.


def _mlp_kernel(x_ref, w1_ref, b1_ref, w2_ref, b2_ref, o_ref):
    # Layer 1 (F.linear): h[b, hid] = sum_k x[b, k] * w1[hid, k] + b1[hid]
    # w1 is in native [hidden, in_ch] layout; contraction is over the last dim
    # of both operands (a @ b.T) -> MXU-native, no inserted transpose.
    h = jax.lax.dot_general(
        x_ref[...], w1_ref[...],
        dimension_numbers=(((1,), (1,)), ((), ())),
        preferred_element_type=jnp.float32)                 # (tb, hidden) f32
    h = jnp.maximum(h + b1_ref[...], 0.0)                   # bias + relu, f32

    # Layer 2, computed transposed so the output is lane-dense on batch:
    #   y[o, b] = sum_hid w2[o, hid] * h[b, hid] + b2[o]
    # Again contraction over the last dims (w2 @ h.T) -> no transpose of the
    # large (tb, hidden) activation.  h stays f32; the tiny w2 tile is upcast.
    y = jax.lax.dot_general(
        w2_ref[...].astype(jnp.float32), h,
        dimension_numbers=(((1,), (1,)), ((), ())),
        preferred_element_type=jnp.float32)                 # (out_ch, tb)
    y = y + b2_ref[...]                                      # (out_ch, 1) bcast

    o_ref[...] = jax.nn.sigmoid(y).astype(o_ref.dtype)       # lane-dense store


def _round_up(n, m):
    return ((n + m - 1) // m) * m


def _num_tensorcores():
    """Best-effort TensorCore count.  Perf-only: controls whether the grid is
    split for megacore.  v5e / v6e have 1 TC per chip -> never split just for
    'parallelism'; v4 / v7x expose 2 TCs per device -> keep an even step count."""
    try:
        kind = jax.devices()[0].device_kind.lower()
    except Exception:
        return 1
    if ("v7" in kind) or ("7x" in kind) or ("v4" in kind):
        return 2
    return 1


def _pick_batch_tile(batch, block_b, in_ch, hidden, out_ch, num_cores):
    """Batch tile: full batch if it fits one max-size tile (no grid split on
    single-TC chips), else the largest 128-multiple tile under the VMEM budget,
    with an even number of grid steps on 2-TC chips."""
    # Per-row VMEM footprint: x + out double-buffered (f32) + f32 hidden act.
    bytes_per_row = 4 * (2 * in_ch + 2 * out_ch + hidden)
    vmem_rows = max(128, (_VMEM_TILE_BUDGET // bytes_per_row) // 128 * 128)
    block_b = max(128, min(block_b, _MAX_TILE_ROWS, vmem_rows))

    if batch <= block_b:
        if num_cores <= 1 or batch <= 256:
            return batch                        # single full block, grid of 1
        # 2 TCs: split into 2 steps, each still as large as possible.
        return min(batch, max(128, _round_up(pl.cdiv(batch, num_cores), 128)))

    tb = (block_b // 128) * 128
    if num_cores > 1:
        steps = _round_up(pl.cdiv(batch, tb), num_cores)    # even step count
        tb = _round_up(pl.cdiv(batch, steps), 128)
    return tb


@functools.partial(jax.jit, static_argnames=("block_b",))
def weight_forward(x, w1, b1, w2, b2, *, block_b=_MAX_TILE_ROWS):
    """x: [B, in_ch]; w1: [hidden, in_ch]; b1: [hidden];
    w2: [out_ch, hidden]; b2: [out_ch].  Returns [B, out_ch]."""
    B, in_ch = x.shape
    hidden = w1.shape[0]
    out_ch = w2.shape[0]

    num_cores = _num_tensorcores()
    tb = _pick_batch_tile(B, block_b, in_ch, hidden, out_ch, num_cores)
    grid = (pl.cdiv(B, tb),)

    # Biases as 2-D tiles matching their broadcast orientation in the kernel.
    b1r = b1.reshape(1, hidden)
    b2c = b2.reshape(out_ch, 1)

    itemsize = x.dtype.itemsize
    cost = pl.CostEstimate(
        flops=2 * B * (in_ch * hidden + hidden * out_ch),
        transcendentals=B * out_ch,                      # sigmoid
        bytes_accessed=itemsize * (B * in_ch + B * out_ch
                                   + hidden * in_ch + out_ch * hidden
                                   + hidden + out_ch),
    )

    # VMEM limit: double-buffered x/out tiles + f32 hidden activation + resident
    # weights, with 2x slack; clamped to a range that is safe on v5e/v6e/v7x.
    weight_bytes = 4 * (hidden * in_ch + out_ch * hidden + hidden + out_ch)
    tile_bytes = 4 * tb * (2 * (in_ch + out_ch) + hidden)
    vmem_limit = int(min(max(2 * (tile_bytes + weight_bytes) + (2 << 20),
                             16 << 20), 32 << 20))

    # NOTE: weights are kept fully resident in VMEM per step.  For large
    # hidden / in_ch (beyond a few MiB) add a K grid axis ("arbitrary") with a
    # VMEM f32 accumulator instead — not needed at meta-weight-net sizes.
    out_t = pl.pallas_call(
        _mlp_kernel,
        out_shape=jax.ShapeDtypeStruct((out_ch, B), x.dtype),
        grid_spec=pltpu.PrefetchScalarGridSpec(
            num_scalar_prefetch=0,
            grid=grid,
            in_specs=[
                pl.BlockSpec((tb, in_ch), lambda i: (i, 0)),       # x tile
                pl.BlockSpec((hidden, in_ch), lambda i: (0, 0)),   # W1 (native)
                pl.BlockSpec((1, hidden), lambda i: (0, 0)),       # b1 row
                pl.BlockSpec((out_ch, hidden), lambda i: (0, 0)),  # W2 (native)
                pl.BlockSpec((out_ch, 1), lambda i: (0, 0)),       # b2 column
            ],
            out_specs=pl.BlockSpec((out_ch, tb), lambda i: (0, i)),
        ),
        compiler_params=pltpu.CompilerParams(
            dimension_semantics=("parallel",),
            vmem_limit_bytes=vmem_limit),
        cost_estimate=cost,
    )(x, w1, b1r, w2, b2c)

    # Transposed (lane-dense) kernel output -> torch layout [B, out_ch].
    return out_t.T


def init_linear_params(key, in_features, out_features, dtype=jnp.float32):
    """Deterministic nn.Linear-style init: U(-1/sqrt(in), 1/sqrt(in))."""
    kw, kb = jax.random.split(key)
    bound = 1.0 / jnp.sqrt(jnp.asarray(in_features, dtype))
    w = jax.random.uniform(kw, (out_features, in_features), dtype,
                           minval=-bound, maxval=bound)
    b = jax.random.uniform(kb, (out_features,), dtype,
                           minval=-bound, maxval=bound)
    return w, b


if __name__ == "__main__":
    # Small shapes implied by Weight(in_channel, hidden, out_channel).
    in_channel, hidden, out_channel = 16, 32, 1

    key = jax.random.PRNGKey(0)
    kx, k1, k2, kx2 = jax.random.split(key, 4)

    w1, b1 = init_linear_params(k1, in_channel, hidden)
    w2, b2 = init_linear_params(k2, hidden, out_channel)

    def ref_fwd(x):
        # Reference in plain JAX (same math as the PyTorch forward).
        return jax.nn.sigmoid(jnp.maximum(x @ w1.T + b1, 0.0) @ w2.T + b2)

    # 1) Tiny meta-weight-net batch: single full-batch block, grid of 1.
    x_small = jax.random.normal(kx, (8, in_channel), jnp.float32)
    out_small = jax.block_until_ready(weight_forward(x_small, w1, b1, w2, b2))
    assert out_small.shape == (8, out_channel)
    assert jnp.allclose(out_small, ref_fwd(x_small), atol=1e-5, rtol=1e-5)

    # 2) Larger batch with an explicit small tile to exercise the multi-step
    #    grid and the masked partial trailing block (4100 = 4 * 1024 + 4).
    x_big = jax.random.normal(kx2, (4100, in_channel), jnp.float32)
    out_big = jax.block_until_ready(
        weight_forward(x_big, w1, b1, w2, b2, block_b=1024))
    assert out_big.shape == (4100, out_channel)
    assert jnp.allclose(out_big, ref_fwd(x_big), atol=3e-5, rtol=1e-4)

    # TODO(synk): MetaModule bookkeeping (update_params / copy / detach_params)
    # is meta-learning machinery, not part of the forward pass — not ported.
    print("KERNEL_OK")
</pallas_src>

<mosaic_0001>
module attributes {stable_mosaic.version = 11 : i64} {
  func.func @_mlp_kernel(%arg0: i32, %arg1: memref<8x16xf32, #tpu.memory_space<vmem>>, %arg2: memref<32x16xf32, #tpu.memory_space<vmem>>, %arg3: memref<1x32xf32, #tpu.memory_space<vmem>>, %arg4: memref<1x32xf32, #tpu.memory_space<vmem>>, %arg5: memref<1x1xf32, #tpu.memory_space<vmem>>, %arg6: memref<1x8xf32, #tpu.memory_space<vmem>>) attributes {dimension_semantics = [#tpu.dimension_semantics<parallel>], iteration_bounds = array<i64: 1>, scalar_prefetch = 0 : i64, scratch_operands = 0 : i64, tpu.core_type = #tpu.core_type<tc>, window_params = [{transform_indices = @transform_0, window_bounds = array<i64: 8, 16>}, {pipeline_mode = #tpu.pipeline_mode<synchronous>, transform_indices = @transform_1, window_bounds = array<i64: 32, 16>}, {pipeline_mode = #tpu.pipeline_mode<synchronous>, transform_indices = @transform_2, window_bounds = array<i64: 1, 32>}, {pipeline_mode = #tpu.pipeline_mode<synchronous>, transform_indices = @transform_3, window_bounds = array<i64: 1, 32>}, {pipeline_mode = #tpu.pipeline_mode<synchronous>, transform_indices = @transform_4, window_bounds = array<i64: 1, 1>}, {transform_indices = @transform_5, window_bounds = array<i64: 1, 8>}]} {
    %c0 = arith.constant 0 : index
    %c0_0 = arith.constant 0 : index
    %0 = vector.load %arg1[%c0, %c0_0] : memref<8x16xf32, #tpu.memory_space<vmem>>, vector<8x16xf32>
    %c0_1 = arith.constant 0 : index
    %c0_2 = arith.constant 0 : index
    %1 = vector.load %arg2[%c0_1, %c0_2] : memref<32x16xf32, #tpu.memory_space<vmem>>, vector<32x16xf32>
    %cst = arith.constant dense<0.000000e+00> : vector<8x32xf32>
    %2 = tpu.matmul %0, %1, %cst {dimension_numbers = #tpu.dot_dimension_numbers<[1], [1], [0], [0], [0, 0, 1, 0], [], []>} : vector<8x16xf32>, vector<32x16xf32>, vector<8x32xf32> -> vector<8x32xf32>
    %c0_3 = arith.constant 0 : index
    %c0_4 = arith.constant 0 : index
    %3 = vector.load %arg3[%c0_3, %c0_4] : memref<1x32xf32, #tpu.memory_space<vmem>>, vector<1x32xf32>
    %4 = vector.broadcast %3 : vector<1x32xf32> to vector<8x32xf32>
    %5 = arith.addf %2, %4 : vector<8x32xf32>
    %cst_5 = arith.constant 0.000000e+00 : f32
    %6 = vector.broadcast %cst_5 : f32 to vector<8x32xf32>
    %7 = arith.maximumf %5, %6 : vector<8x32xf32>
    %c0_6 = arith.constant 0 : index
    %c0_7 = arith.constant 0 : index
    %8 = vector.load %arg4[%c0_6, %c0_7] : memref<1x32xf32, #tpu.memory_space<vmem>>, vector<1x32xf32>
    %cst_8 = arith.constant dense<0.000000e+00> : vector<1x8xf32>
    %9 = tpu.matmul %8, %7, %cst_8 {dimension_numbers = #tpu.dot_dimension_numbers<[1], [1], [0], [0], [0, 0, 1, 0], [], []>} : vector<1x32xf32>, vector<8x32xf32>, vector<1x8xf32> -> vector<1x8xf32>
    %c0_9 = arith.constant 0 : index
    %c0_10 = arith.constant 0 : index
    %10 = vector.load %arg5[%c0_9, %c0_10] : memref<1x1xf32, #tpu.memory_space<vmem>>, vector<1x1xf32>
    %11 = vector.broadcast %10 : vector<1x1xf32> to vector<1x8xf32>
    %12 = arith.addf %9, %11 : vector<1x8xf32>
    %13 = arith.negf %12 : vector<1x8xf32>
    %14 = math.exp %13 : vector<1x8xf32>
    %cst_11 = arith.constant 1.000000e+00 : f32
    %15 = vector.broadcast %cst_11 : f32 to vector<1x8xf32>
    %16 = arith.addf %15, %14 : vector<1x8xf32>
    %17 = arith.divf %15, %16 : vector<1x8xf32>
    %c0_12 = arith.constant 0 : index
    %c0_13 = arith.constant 0 : index
    %18 = vector.load %arg6[%c0_12, %c0_13] : memref<1x8xf32, #tpu.memory_space<vmem>>, vector<1x8xf32>
    tpu.vector_store %arg6[%c0_12, %c0_13], %17 {strides = array<i32>} : memref<1x8xf32, #tpu.memory_space<vmem>>, vector<1x8xf32>,
    return
  }
  func.func @transform_0(%arg0: i32) -> (i32, i32) {
    %c0_i32 = arith.constant 0 : i32
    %c0_i32_0 = arith.constant 0 : i32
    return %arg0, %c0_i32 : i32, i32
  }
  func.func @transform_1(%arg0: i32) -> (i32, i32) {
    %c0_i32 = arith.constant 0 : i32
    %c0_i32_0 = arith.constant 0 : i32
    %c0_i32_1 = arith.constant 0 : i32
    return %c0_i32, %c0_i32_0 : i32, i32
  }
  func.func @transform_2(%arg0: i32) -> (i32, i32) {
    %c0_i32 = arith.constant 0 : i32
    %c0_i32_0 = arith.constant 0 : i32
    %c0_i32_1 = arith.constant 0 : i32
    return %c0_i32, %c0_i32_0 : i32, i32
  }
  func.func @transform_3(%arg0: i32) -> (i32, i32) {
    %c0_i32 = arith.constant 0 : i32
    %c0_i32_0 = arith.constant 0 : i32
    %c0_i32_1 = arith.constant 0 : i32
    return %c0_i32, %c0_i32_0 : i32, i32
  }
  func.func @transform_4(%arg0: i32) -> (i32, i32) {
    %c0_i32 = arith.constant 0 : i32
    %c0_i32_0 = arith.constant 0 : i32
    %c0_i32_1 = arith.constant 0 : i32
    return %c0_i32, %c0_i32_0 : i32, i32
  }
  func.func @transform_5(%arg0: i32) -> (i32, i32) {
    %c0_i32 = arith.constant 0 : i32
    %c0_i32_0 = arith.constant 0 : i32
    return %c0_i32, %arg0 : i32, i32
  }
}

</mosaic_0001>

<llo_original>
// kernel: weight_forward.1
$region0: #{weight_forward.1}
  #allocation0 [shape = 'u32[]', space=smem, size = 0x4, offset = 0x4, fixed_abs, tag = 'smem constant byte address 0x4 - core index']
  #allocation1 [shape = 'u32[144,128]{1,0:T(1,128)}', space=vmem, size = 0x12000, scoped, tag = 'internal scratch']
  #allocation2 [shape = 'f32[1,1]{1,0:T(1,128)S(1)}', space=vmem, size = 0x200, scoped, tag = 'scoped memory for weight_forward.1']
  %s0 = inlined_call_operand.vmem [shape: f32[8,16], index: 0, kind: input, shape index: {}]
  %s1 = inlined_call_operand.vmem [shape: f32[32,16], index: 1, kind: input, shape index: {}]
  %s2 = inlined_call_operand.vmem [shape: f32[1,32], index: 2, kind: input, shape index: {}]
  %s3 = inlined_call_operand.vmem [shape: f32[1,32], index: 3, kind: input, shape index: {}]
  %s4 = inlined_call_operand.<no memory space> [shape: f32[1,1], index: 4, kind: input, shape index: {}]
  %s5 = inlined_call_operand.hbm [shape: f32[1,8], index: 5, kind: output, shape index: {}]
  %s6 = sld [smem:[#allocation0]]
  $region30: #{weight_forward.1} parent=0
    _
  %s8 = ssub.s32 1, %s6
  %s9 = scalar_select 0, %s8, %s6
  %v10 = vstv %s4
  %11 = vst [vmem:[#allocation2] sm:$0x1] %v10
  $region1: #{weight_forward.1} parent=0
    #allocation3 [shape = 'u8[512]{0}', space=vmem, size = 0x400, scoped, tag = 'output window, operand 0, single buffered']
    #allocation4 [shape = 's32[1]{0}', space=sflag, size = 0x4, scoped, tag = 'scoped memory for weight_forward.1']
    %12 = vsyncpa [#allocation4], 0
    // Predicated region
    $region2: #{weight_forward.1} parent=1 // pred_check
      _
    $region3: #{weight_forward.1} parent=1 // pred_check_branch
      %14 = sbr.rel (0) target = $region5
    $region4: #{weight_forward.1} parent=1 // pred_region
      _
    $region5: #{weight_forward.1} parent=1 // pred_fallthru
      _
    // Predicated region
    $region6: #{weight_forward.1} parent=1 // pred_check
      _
    $region7: #{weight_forward.1} parent=1 // pred_check_branch
      %16 = sbr.rel (0) target = $region9
    $region8: #{weight_forward.1} parent=1 // pred_region
      _
    $region9: #{weight_forward.1} parent=1 // pred_fallthru
      _
    // Predicated region
    $region10: #{weight_forward.1} parent=1 // pred_check
      _
    $region11: #{weight_forward.1} parent=1 // pred_check_branch
      %18 = sbr.rel (0) target = $region13
    $region12: #{weight_forward.1} parent=1 // pred_region
      _
    $region13: #{weight_forward.1} parent=1 // pred_fallthru
      _
    // Predicated region
    $region14: #{weight_forward.1} parent=1 // pred_check
      _
    $region15: #{weight_forward.1} parent=1 // pred_check_branch
      %20 = sbr.rel (0) target = $region17
    $region16: #{weight_forward.1} parent=1 // pred_region
      _
    $region17: #{weight_forward.1} parent=1 // pred_fallthru
      _
    // Predicated region
    $region18: #{weight_forward.1} parent=1 // pred_check
      _
    $region19: #{weight_forward.1} parent=1 // pred_check_branch
      %22 = sbr.rel (0) target = $region21
    $region20: #{weight_forward.1} parent=1 // pred_region
      _
    $region21: #{weight_forward.1} parent=1 // pred_fallthru
      _
    %v23 = vld [vmem:[%s0] sm:$0xff]
    %v24 = vld [vmem:[%s1] sm:$0xff]
    %v25 = vld [vmem:[%s1 + $0x8] sm:$0xff]
    %v26 = vld [vmem:[%s1 + $0x10] sm:$0xff]
    %v27 = vld [vmem:[%s1 + $0x18] sm:$0xff]
    %v28 = vld [vmem:[%s2] sm:$0x1]
    %v30 = vlaneseq
    %v31 = vshrl.u32 %v30, 7
    %v32 = vsub.s32 0, %v31
    %v33 = vrot.slane %v28, %v32
    %vm35 = vcmask 130048
    %v37 = vsel %vm35, %v23, 0
    %v40 = vsel %vm35, %v24, 0
    %v43 = vsel %vm35, %v25, 0
    %v46 = vsel %vm35, %v26, 0
    %v49 = vsel %vm35, %v27, 0
    %51 = vmatprep.subr.mxu0 0.0
    %52 = vmatpush1.xpose.msra.mxu0 0.0
    %53 = vmatprep.subr.mxu0 0.0
    %54 = vmatpush1.xpose.msra.mxu0 0.0
    %55 = vmatprep.subr.mxu0 0.0
    %56 = vmatpush1.xpose.msra.mxu0 0.0
    %57 = vmatprep.subr.mxu0 0.0
    %58 = vmatpush1.xpose.msra.mxu0 0.0
    %59 = vmatprep.subr.mxu0 0.0
    %60 = vmatpush1.xpose.msra.mxu0 0.0
    %61 = vmatprep.subr.mxu0 0.0
    %62 = vmatpush1.xpose.msra.mxu0 0.0
    %63 = vmatprep.subr.mxu0 0.0
    %64 = vmatpush1.xpose.msra.mxu0 0.0
    %65 = vmatprep.subr.mxu0 0.0
    %66 = vmatpush1.xpose.msra.mxu0 0.0
    %67 = vmatprep.subr.mxu0 0.0
    %68 = vmatpush1.xpose.msra.mxu0 0.0
    %69 = vmatprep.subr.mxu0 0.0
    %70 = vmatpush1.xpose.msra.mxu0 0.0
    %71 = vmatprep.subr.mxu0 0.0
    %72 = vmatpush1.xpose.msra.mxu0 0.0
    %73 = vmatprep.subr.mxu0 0.0
    %74 = vmatpush1.xpose.msra.mxu0 0.0
    %75 = vmatprep.subr.mxu0 0.0
    %76 = vmatpush1.xpose.msra.mxu0 %v49
    %77 = vmatprep.subr.mxu0 0.0
    %78 = vmatpush1.xpose.msra.mxu0 %v46
    %79 = vmatprep.subr.mxu0 0.0
    %80 = vmatpush1.xpose.msra.mxu0 %v43
    %81 = vmatprep.subr.mxu0 0.0
    %82 = vmatpush1.xpose.msra.mxu0 %v40
    %83 = vmatprep.subr.mxu0 0.0
    %84 = vmatpush2.xpose.msra.mxu0 0.0
    %85 = vmatprep.subr.mxu0 0.0
    %86 = vmatpush2.xpose.msra.mxu0 0.0
    %87 = vmatprep.subr.mxu0 0.0
    %88 = vmatpush2.xpose.msra.mxu0 0.0
    %89 = vmatprep.subr.mxu0 0.0
    %90 = vmatpush2.xpose.msra.mxu0 0.0
    %91 = vmatprep.subr.mxu0 0.0
    %92 = vmatpush2.xpose.msra.mxu0 0.0
    %93 = vmatprep.subr.mxu0 0.0
    %94 = vmatpush2.xpose.msra.mxu0 0.0
    %95 = vmatprep.subr.mxu0 0.0
    %96 = vmatpush2.xpose.msra.mxu0 0.0
    %97 = vmatprep.subr.mxu0 0.0
    %98 = vmatpush2.xpose.msra.mxu0 0.0
    %99 = vmatprep.subr.mxu0 0.0
    %100 = vmatpush2.xpose.msra.mxu0 0.0
    %101 = vmatprep.subr.mxu0 0.0
    %102 = vmatpush2.xpose.msra.mxu0 0.0
    %103 = vmatprep.subr.mxu0 0.0
    %104 = vmatpush2.xpose.msra.mxu0 0.0
    %105 = vmatprep.subr.mxu0 0.0
    %106 = vmatpush2.xpose.msra.mxu0 0.0
    %107 = vmatprep.subr.mxu0 0.0
    %108 = vmatpush2.xpose.msra.mxu0 0.0
    %109 = vmatprep.subr.mxu0 0.0
    %110 = vmatpush2.xpose.msra.mxu0 0.0
    %111 = vmatprep.subr.mxu0 0.0
    %112 = vmatpush2.xpose.msra.mxu0 0.0
    %113 = vmatprep.subr.mxu0 0.0
    %114 = vmatpush2.xpose.msra.mxu0 0.0
    %115 = vmatprep.mubr.f32.mxu0 0.0
    %116 = vmatmul.mubr.f32.gmra.mxu0 %v37
    %v117 = vpop.f32.mrf.mxu0
    %v118 = vadd.f32 %v33, %v117
    %v119 = vpop.f32.mrf.mxu0
    %120 = vdwg.mxu0
    %v121 = vmax.f32 %v118, 0.0
    %v122 = vld [vmem:[%s3] sm:$0x1]
    %v123 = vld [vmem:[#allocation2] sm:$0x1]
    %125 = vset.pattern.permute.xlu0 0
    %126 = vperm.xlu0 %125, %v123
    %v127 = vpop.permute.xlu0 %126
    %v129 = vlaneseq
    %v130 = vshrl.u32 %v129, 7
    %v131 = vsub.s32 0, %v130
    %v132 = vrot.slane %v127, %v131
    %vm133 = vcmask 261120
    %v135 = vsel %vm133, %v122, 0
    %v138 = vsel %vm133, %v121, 0
    %140 = vmatprep.subr.mxu0 0.0
    %141 = vmatpush1.xpose.msra.mxu0 0.0
    %142 = vmatprep.subr.mxu0 0.0
    %143 = vmatpush1.xpose.msra.mxu0 0.0
    %144 = vmatprep.subr.mxu0 0.0
    %145 = vmatpush1.xpose.msra.mxu0 0.0
    %146 = vmatprep.subr.mxu0 0.0
    %147 = vmatpush1.xpose.msra.mxu0 0.0
    %148 = vmatprep.subr.mxu0 0.0
    %149 = vmatpush1.xpose.msra.mxu0 0.0
    %150 = vmatprep.subr.mxu0 0.0
    %151 = vmatpush1.xpose.msra.mxu0 0.0
    %152 = vmatprep.subr.mxu0 0.0
    %153 = vmatpush1.xpose.msra.mxu0 0.0
    %154 = vmatprep.subr.mxu0 0.0
    %155 = vmatpush1.xpose.msra.mxu0 0.0
    %156 = vmatprep.subr.mxu0 0.0
    %157 = vmatpush1.xpose.msra.mxu0 0.0
    %158 = vmatprep.subr.mxu0 0.0
    %159 = vmatpush1.xpose.msra.mxu0 0.0
    %160 = vmatprep.subr.mxu0 0.0
    %161 = vmatpush1.xpose.msra.mxu0 0.0
    %162 = vmatprep.subr.mxu0 0.0
    %163 = vmatpush1.xpose.msra.mxu0 0.0
    %164 = vmatprep.subr.mxu0 0.0
    %165 = vmatpush1.xpose.msra.mxu0 0.0
    %166 = vmatprep.subr.mxu0 0.0
    %167 = vmatpush1.xpose.msra.mxu0 0.0
    %168 = vmatprep.subr.mxu0 0.0
    %169 = vmatpush1.xpose.msra.mxu0 0.0
    %170 = vmatprep.subr.mxu0 0.0
    %171 = vmatpush1.xpose.msra.mxu0 %v138
    %172 = vmatprep.subr.mxu0 0.0
    %173 = vmatpush2.xpose.msra.mxu0 0.0
    %174 = vmatprep.subr.mxu0 0.0
    %175 = vmatpush2.xpose.msra.mxu0 0.0
    %176 = vmatprep.subr.mxu0 0.0
    %177 = vmatpush2.xpose.msra.mxu0 0.0
    %178 = vmatprep.subr.mxu0 0.0
    %179 = vmatpush2.xpose.msra.mxu0 0.0
    %180 = vmatprep.subr.mxu0 0.0
    %181 = vmatpush2.xpose.msra.mxu0 0.0
    %182 = vmatprep.subr.mxu0 0.0
    %183 = vmatpush2.xpose.msra.mxu0 0.0
    %184 = vmatprep.subr.mxu0 0.0
    %185 = vmatpush2.xpose.msra.mxu0 0.0
    %186 = vmatprep.subr.mxu0 0.0
    %187 = vmatpush2.xpose.msra.mxu0 0.0
    %188 = vmatprep.subr.mxu0 0.0
    %189 = vmatpush2.xpose.msra.mxu0 0.0
    %190 = vmatprep.subr.mxu0 0.0
    %191 = vmatpush2.xpose.msra.mxu0 0.0
    %192 = vmatprep.subr.mxu0 0.0
    %193 = vmatpush2.xpose.msra.mxu0 0.0
    %194 = vmatprep.subr.mxu0 0.0
    %195 = vmatpush2.xpose.msra.mxu0 0.0
    %196 = vmatprep.subr.mxu0 0.0
    %197 = vmatpush2.xpose.msra.mxu0 0.0
    %198 = vmatprep.subr.mxu0 0.0
    %199 = vmatpush2.xpose.msra.mxu0 0.0
    %200 = vmatprep.subr.mxu0 0.0
    %201 = vmatpush2.xpose.msra.mxu0 0.0
    %202 = vmatprep.subr.mxu0 0.0
    %203 = vmatpush2.xpose.msra.mxu0 0.0
    %204 = vmatprep.mubr.f32.mxu0 0.0
    %205 = vmatmul.mubr.f32.gmra.mxu0 %v135
    %v206 = vpop.f32.mrf.mxu0
    %v207 = vadd.f32 %v132, %v206
    %v208 = vpop.f32.mrf.mxu0
    %209 = vdwg.mxu0
    %v210 = vxor.u32 %v207, 2147483648
    %v211 = vmul.f32 %v210, 1.442695
    %v212 = vpow.pop %v211
    %v213 = vadd.f32 %v212, 1.0
    %v214 = vrcp.pop %v213
    %v215 = vmul.f32 1.0, %v214
    %vm216 = vcmask 57344
    %217 = vst.msk [vmem:[#allocation3] sm:$0x1] %vm216, %v215
    // Predicated region
    $region22: #{weight_forward.1} parent=1 // pred_check
      _
    $region23: #{weight_forward.1} parent=1 // pred_check_branch
      %219 = sbr.rel (0) target = $region25
    $region24: #{weight_forward.1} parent=1 // pred_region
      %s221 = ssub.s32 16, 16
      %222 = vsyncadd [#allocation4], %s221
      %s224 = sshll.u32 [#allocation3], 4
      %s225 = int_to_ptr.vmem [resolvable:$true] %s224
      %227 = dma.vmem_to_hbm [thread:$0]  %s225, 16, %s5, [#allocation4]
    $region25: #{weight_forward.1} parent=1 // pred_fallthru
      _
    // Predicated region
    $region26: #{weight_forward.1} parent=1 // pred_check
      _
    $region27: #{weight_forward.1} parent=1 // pred_check_branch
      %229 = sbr.rel (0) target = $region29
    $region28: #{weight_forward.1} parent=1 // pred_region
      %230 = dma.done [#allocation4], 16
    $region29: #{weight_forward.1} parent=1 // pred_fallthru
      _
    %231 = vsyncpa [#allocation4], 1

</llo_original>
